<compile_context>
chip_gen: v5e
topology: v5e:2x2
jax: 0.10.0
libtpu: 0.0.40
codegen_flags: <defaults>
</compile_context>

<pallas_src>
import functools

import jax
import jax.numpy as jnp
from jax.experimental import pallas as pl
from jax.experimental.pallas import tpu as pltpu

LN_EPS = 1e-5  # nn.LayerNorm default


def _round_up(x, m):
    return (x + m - 1) // m * m


def _cdiv(a, b):
    return -(-a // b)


def _vmem_capacity_bytes():
    """Physical VMEM per core (trace-time query), conservative fallback."""
    try:
        return int(pltpu.get_tpu_info().vmem_capacity_bytes)
    except Exception:
        return 64 << 20  # conservative (v7x-sized) fallback


def _choose_tm(n_rows, tm_max):
    """Pick a row-tile size that (a) is a sublane multiple of 8, (b) never
    exceeds tm_max, and (c) avoids pathological padding (rows_pad ~= n_rows)."""
    n_rows8 = _round_up(n_rows, 8)
    if n_rows8 <= tm_max:
        return n_rows8
    n_tiles = _cdiv(n_rows8, tm_max)
    return _round_up(_cdiv(n_rows8, n_tiles), 8)


def _layer_norm_f32(r, gamma, beta):
    mean = jnp.mean(r, axis=-1, keepdims=True)
    centered = r - mean
    var = jnp.mean(centered * centered, axis=-1, keepdims=True)
    return centered * jax.lax.rsqrt(var + LN_EPS) * gamma + beta


# --------------------------------------------------------------------------
# Kernels
# --------------------------------------------------------------------------
def _ffn_kernel_single(x_ref, w1_ref, b1_ref, w2_ref, b2_ref, gamma_ref,
                       beta_ref, o_ref):
    """Fast path: grid = (rows // tm,), whole d_ff in one chunk."""
    x_bf = x_ref[...].astype(jnp.bfloat16)
    h = jnp.dot(x_bf, w1_ref[...], preferred_element_type=jnp.float32)
    h = jnp.maximum(h + b1_ref[...], 0.0)
    y = jnp.dot(h.astype(jnp.bfloat16), w2_ref[...],
                preferred_element_type=jnp.float32)
    r = x_ref[...].astype(jnp.float32) + y + b2_ref[...]
    o_ref[...] = _layer_norm_f32(r, gamma_ref[...], beta_ref[...]).astype(o_ref.dtype)


def _ffn_kernel_reduce(x_ref, w1_ref, b1_ref, w2_ref, b2_ref, gamma_ref,
                       beta_ref, o_ref, acc_ref, xbf_ref):
    """Grid: (rows // tm, d_ff // tk_ff).  Axis 1 is a reduction over d_ff."""
    k = pl.program_id(1)

    @pl.when(k == 0)
    def _init():
        acc_ref[...] = jnp.zeros_like(acc_ref)
        # cast x once per row tile; reused by every reduction step
        xbf_ref[...] = x_ref[...].astype(jnp.bfloat16)

    h = jnp.dot(xbf_ref[...], w1_ref[...], preferred_element_type=jnp.float32)
    h = jnp.maximum(h + b1_ref[...], 0.0)                       # ReLU in f32
    acc_ref[...] += jnp.dot(h.astype(jnp.bfloat16), w2_ref[...],
                            preferred_element_type=jnp.float32)

    @pl.when(k == pl.num_programs(1) - 1)
    def _finalize():
        # residual + LayerNorm in f32, using original-precision x
        r = x_ref[...].astype(jnp.float32) + acc_ref[...] + b2_ref[...]
        o_ref[...] = _layer_norm_f32(r, gamma_ref[...], beta_ref[...]).astype(o_ref.dtype)


# --------------------------------------------------------------------------
# Wrapper
# --------------------------------------------------------------------------
@functools.partial(jax.jit, static_argnames=("tm", "tk_ff"))
def position_wise_ffn(x, w1, b1, w2, b2, gamma, beta, *, tm=None, tk_ff=None):
    """x: (B, S, d_model). Weights in (in, out) layout (transposed relative to
    PyTorch's nn.Linear (out, in)). b1/b2/gamma/beta are (1, N)."""
    B, S, d_model = x.shape
    d_ff = w1.shape[1]
    n_rows = B * S
    xb = x.dtype.itemsize
    wb = 2  # bf16 weights

    # ---- per-generation tile defaults, derived from physical VMEM ----
    vmem_cap = _vmem_capacity_bytes()
    big_vmem = vmem_cap >= (100 << 20)              # v5e / v6e (128 MiB)
    tm_max = tm if tm is not None else (512 if big_vmem else 256)
    tk_max = tk_ff if tk_ff is not None else (1024 if big_vmem else 512)
    vmem_cap_limit = int(vmem_cap * 0.8)            # leave compiler headroom

    # ---- row tiling (smart padding: rows_pad ~= n_rows) ----
    tm_eff = _choose_tm(n_rows, tm_max)
    rows_pad = _round_up(n_rows, tm_eff)
    n_row_tiles = rows_pad // tm_eff

    # ---- pad rows; zero padding is exact (relu(0)=0 contributes 0) ----
    x2d = x.reshape(n_rows, d_model)
    if rows_pad != n_rows:
        x2d = jnp.pad(x2d, ((0, rows_pad - n_rows), (0, 0)))

    dff_lane = _round_up(d_ff, 128)

    # ---- small-problem fast path: whole d_ff in one chunk ----
    fast_est = (2 * tm_eff * d_model * xb            # x blocks (double buffered)
                + 2 * tm_eff * d_model * xb          # out blocks
                + 2 * d_model * dff_lane * wb        # W1 (bf16, double buffered)
                + 2 * dff_lane * d_model * wb        # W2 (bf16, double buffered)
                + 2 * tm_eff * dff_lane * 4          # h intermediate headroom
                + (2 << 20))
    use_fast = (tk_ff is None) and (fast_est <= int(vmem_cap * 0.6))

    if use_fast:
        dff_pad = dff_lane
    else:
        tk_eff = min(tk_max, dff_lane)
        dff_pad = _round_up(d_ff, tk_eff)

    # ---- pad d_ff and pre-cast weights to bf16 (halves the HBM weight stream)
    w1p, b1p, w2p = w1, b1, w2
    if dff_pad != d_ff:
        w1p = jnp.pad(w1p, ((0, 0), (0, dff_pad - d_ff)))
        b1p = jnp.pad(b1p, ((0, 0), (0, dff_pad - d_ff)))
        w2p = jnp.pad(w2p, ((0, dff_pad - d_ff), (0, 0)))
    w1_bf = w1p.astype(jnp.bfloat16)
    w2_bf = w2p.astype(jnp.bfloat16)
    b1_f32 = b1p.astype(jnp.float32)
    b2_f32 = b2.astype(jnp.float32)
    gamma_f32 = gamma.astype(jnp.float32)
    beta_f32 = beta.astype(jnp.float32)

    # ---- cost estimate (weights re-streamed once per row tile, at bf16) ----
    flops = 4 * rows_pad * d_model * dff_pad
    bytes_accessed = (rows_pad * d_model * xb                    # x in
                      + rows_pad * d_model * xb                  # out
                      + n_row_tiles * 2 * d_model * dff_pad * wb  # W1 + W2
                      + dff_pad * 4 + 3 * d_model * 4)            # b1,b2,gamma,beta
    cost = pl.CostEstimate(flops=flops, transcendentals=rows_pad,
                           bytes_accessed=bytes_accessed)

    if use_fast:
        vmem_limit = int(min(max(fast_est + (4 << 20), 32 << 20), vmem_cap_limit))
        out2d = pl.pallas_call(
            _ffn_kernel_single,
            out_shape=jax.ShapeDtypeStruct((rows_pad, d_model), x.dtype),
            grid_spec=pltpu.PrefetchScalarGridSpec(
                num_scalar_prefetch=0,
                grid=(n_row_tiles,),
                in_specs=[
                    pl.BlockSpec((tm_eff, d_model), lambda i: (i, 0)),    # x tile
                    pl.BlockSpec((d_model, dff_pad), lambda i: (0, 0)),   # W1 (bf16)
                    pl.BlockSpec((1, dff_pad), lambda i: (0, 0)),         # b1
                    pl.BlockSpec((dff_pad, d_model), lambda i: (0, 0)),   # W2 (bf16)
                    pl.BlockSpec((1, d_model), lambda i: (0, 0)),         # b2
                    pl.BlockSpec((1, d_model), lambda i: (0, 0)),         # gamma
                    pl.BlockSpec((1, d_model), lambda i: (0, 0)),         # beta
                ],
                out_specs=pl.BlockSpec((tm_eff, d_model), lambda i: (i, 0)),
            ),
            compiler_params=pltpu.CompilerParams(
                dimension_semantics=("parallel",),
                vmem_limit_bytes=vmem_limit,
            ),
            cost_estimate=cost,
        )(x2d, w1_bf, b1_f32, w2_bf, b2_f32, gamma_f32, beta_f32)
        return out2d[:n_rows].reshape(B, S, d_model)

    # ---- general path: reduction over d_ff chunks ----
    grid = (n_row_tiles, dff_pad // tk_eff)

    vmem_est = (2 * tm_eff * d_model * xb            # x blocks
                + 2 * tm_eff * d_model * xb          # out blocks
                + 2 * d_model * tk_eff * wb          # W1 chunks (bf16)
                + 2 * tk_eff * d_model * wb          # W2 chunks (bf16)
                + tm_eff * d_model * 4               # f32 accumulator scratch
                + tm_eff * d_model * 2               # bf16 x scratch
                + 2 * tm_eff * tk_eff * 4            # ReLU intermediate headroom
                + (2 << 20))
    vmem_limit = int(min(max(vmem_est + (4 << 20), 32 << 20), vmem_cap_limit))

    out2d = pl.pallas_call(
        _ffn_kernel_reduce,
        out_shape=jax.ShapeDtypeStruct((rows_pad, d_model), x.dtype),
        grid_spec=pltpu.PrefetchScalarGridSpec(
            num_scalar_prefetch=0,
            grid=grid,
            in_specs=[
                pl.BlockSpec((tm_eff, d_model), lambda i, k: (i, 0)),   # x tile
                pl.BlockSpec((d_model, tk_eff), lambda i, k: (0, k)),   # W1 chunk (bf16)
                pl.BlockSpec((1, tk_eff), lambda i, k: (0, k)),         # b1 chunk
                pl.BlockSpec((tk_eff, d_model), lambda i, k: (k, 0)),   # W2 chunk (bf16)
                pl.BlockSpec((1, d_model), lambda i, k: (0, 0)),        # b2
                pl.BlockSpec((1, d_model), lambda i, k: (0, 0)),        # gamma
                pl.BlockSpec((1, d_model), lambda i, k: (0, 0)),        # beta
            ],
            out_specs=pl.BlockSpec((tm_eff, d_model), lambda i, k: (i, 0)),
            scratch_shapes=[pltpu.VMEM((tm_eff, d_model), jnp.float32),
                            pltpu.VMEM((tm_eff, d_model), jnp.bfloat16)],
        ),
        compiler_params=pltpu.CompilerParams(
            dimension_semantics=("parallel", "arbitrary"),
            vmem_limit_bytes=vmem_limit,
        ),
        cost_estimate=cost,
    )(x2d, w1_bf, b1_f32, w2_bf, b2_f32, gamma_f32, beta_f32)

    return out2d[:n_rows].reshape(B, S, d_model)


# --------------------------------------------------------------------------
# References
# --------------------------------------------------------------------------
def _reference_bf16(x, w1, b1, w2, b2, gamma, beta):
    """Matches the kernel's numerics: bf16 matmul operands, f32 accum, f32 LN."""
    xb = x.astype(jnp.bfloat16)
    h = jnp.dot(xb, w1.astype(jnp.bfloat16), preferred_element_type=jnp.float32) + b1
    h = jnp.maximum(h, 0.0)
    y = jnp.dot(h.astype(jnp.bfloat16), w2.astype(jnp.bfloat16),
                preferred_element_type=jnp.float32) + b2
    r = x.astype(jnp.float32) + y
    mean = jnp.mean(r, axis=-1, keepdims=True)
    var = jnp.mean((r - mean) ** 2, axis=-1, keepdims=True)
    return (r - mean) / jnp.sqrt(var + LN_EPS) * gamma + beta


def _reference_f32(x, w1, b1, w2, b2, gamma, beta):
    h = jnp.maximum(x @ w1 + b1, 0.0)
    y = h @ w2 + b2
    r = x + y
    mean = jnp.mean(r, axis=-1, keepdims=True)
    var = jnp.mean((r - mean) ** 2, axis=-1, keepdims=True)
    return (r - mean) / jnp.sqrt(var + LN_EPS) * gamma + beta


if __name__ == "__main__":
    # Small, module-consistent shapes: d_model=128, d_ff=512, batch=2, seq=8.
    B, S, d_model, d_ff = 2, 8, 128, 512

    key = jax.random.PRNGKey(0)
    kx, k1, k2, k3, k4 = jax.random.split(key, 5)

    x = jax.random.normal(kx, (B, S, d_model), dtype=jnp.float32)

    # Deterministic parameter init (Kaiming-uniform-ish scale, like nn.Linear)
    bound1 = 1.0 / (d_model ** 0.5)
    bound2 = 1.0 / (d_ff ** 0.5)
    w1 = jax.random.uniform(k1, (d_model, d_ff), jnp.float32, -bound1, bound1)
    b1 = jax.random.uniform(k2, (1, d_ff), jnp.float32, -bound1, bound1)
    w2 = jax.random.uniform(k3, (d_ff, d_model), jnp.float32, -bound2, bound2)
    b2 = jax.random.uniform(k4, (1, d_model), jnp.float32, -bound2, bound2)
    gamma = jnp.ones((1, d_model), jnp.float32)   # LayerNorm weight init
    beta = jnp.zeros((1, d_model), jnp.float32)   # LayerNorm bias init

    ref_bf16 = _reference_bf16(x, w1, b1, w2, b2, gamma, beta)
    ref_f32 = _reference_f32(x, w1, b1, w2, b2, gamma, beta)

    # 1) Default call -> small-problem fast path (single-step kernel).
    out_fast = jax.block_until_ready(
        position_wise_ffn(x, w1, b1, w2, b2, gamma, beta))
    assert out_fast.shape == (B, S, d_model)
    assert jnp.allclose(out_fast, ref_bf16, atol=2e-3, rtol=2e-3), "fast path vs bf16 ref"
    assert jnp.allclose(out_fast, ref_f32, atol=5e-2, rtol=5e-2), "fast path vs f32 ref"

    # 2) tk_ff=256 -> two reduction steps over d_ff (exercises the accumulator path).
    out_red = jax.block_until_ready(
        position_wise_ffn(x, w1, b1, w2, b2, gamma, beta, tk_ff=256))
    assert jnp.allclose(out_red, ref_bf16, atol=2e-3, rtol=2e-3), "reduce path vs bf16 ref"

    # 3) Non-divisible rows (S=9 -> 18 rows, padded) through the reduce path.
    x_odd = jax.random.normal(kx, (B, 9, d_model), dtype=jnp.float32)
    out_odd = jax.block_until_ready(
        position_wise_ffn(x_odd, w1, b1, w2, b2, gamma, beta, tk_ff=256))
    ref_odd = _reference_bf16(x_odd, w1, b1, w2, b2, gamma, beta)
    assert jnp.allclose(out_odd, ref_odd, atol=2e-3, rtol=2e-3), "mismatch (padded rows)"

    print("KERNEL_OK")
</pallas_src>

<mosaic_0001>
module attributes {stable_mosaic.version = 11 : i64} {
  func.func @_ffn_kernel_single(%arg0: i32, %arg1: memref<16x128xf32, #tpu.memory_space<vmem>>, %arg2: memref<128x512xbf16, #tpu.memory_space<vmem>>, %arg3: memref<1x512xf32, #tpu.memory_space<vmem>>, %arg4: memref<512x128xbf16, #tpu.memory_space<vmem>>, %arg5: memref<1x128xf32, #tpu.memory_space<vmem>>, %arg6: memref<1x128xf32, #tpu.memory_space<vmem>>, %arg7: memref<1x128xf32, #tpu.memory_space<vmem>>, %arg8: memref<16x128xf32, #tpu.memory_space<vmem>>) attributes {dimension_semantics = [#tpu.dimension_semantics<parallel>], iteration_bounds = array<i64: 1>, scalar_prefetch = 0 : i64, scratch_operands = 0 : i64, tpu.core_type = #tpu.core_type<tc>, window_params = [{transform_indices = @transform_0, window_bounds = array<i64: 16, 128>}, {pipeline_mode = #tpu.pipeline_mode<synchronous>, transform_indices = @transform_1, window_bounds = array<i64: 128, 512>}, {pipeline_mode = #tpu.pipeline_mode<synchronous>, transform_indices = @transform_2, window_bounds = array<i64: 1, 512>}, {pipeline_mode = #tpu.pipeline_mode<synchronous>, transform_indices = @transform_3, window_bounds = array<i64: 512, 128>}, {pipeline_mode = #tpu.pipeline_mode<synchronous>, transform_indices = @transform_4, window_bounds = array<i64: 1, 128>}, {pipeline_mode = #tpu.pipeline_mode<synchronous>, transform_indices = @transform_5, window_bounds = array<i64: 1, 128>}, {pipeline_mode = #tpu.pipeline_mode<synchronous>, transform_indices = @transform_6, window_bounds = array<i64: 1, 128>}, {transform_indices = @transform_7, window_bounds = array<i64: 16, 128>}]} {
    %c0 = arith.constant 0 : index
    %c0_0 = arith.constant 0 : index
    %0 = vector.load %arg1[%c0, %c0_0] : memref<16x128xf32, #tpu.memory_space<vmem>>, vector<16x128xf32>
    %1 = arith.truncf %0 : vector<16x128xf32> to vector<16x128xbf16>
    %c0_1 = arith.constant 0 : index
    %c0_2 = arith.constant 0 : index
    %2 = vector.load %arg2[%c0_1, %c0_2] : memref<128x512xbf16, #tpu.memory_space<vmem>>, vector<128x512xbf16>
    %cst = arith.constant dense<0.000000e+00> : vector<16x512xf32>
    %3 = tpu.matmul %1, %2, %cst {dimension_numbers = #tpu.dot_dimension_numbers<[1], [0], [0], [1], [0, 0, 1, 1], [], []>} : vector<16x128xbf16>, vector<128x512xbf16>, vector<16x512xf32> -> vector<16x512xf32>
    %c0_3 = arith.constant 0 : index
    %c0_4 = arith.constant 0 : index
    %4 = vector.load %arg3[%c0_3, %c0_4] : memref<1x512xf32, #tpu.memory_space<vmem>>, vector<1x512xf32>
    %5 = vector.broadcast %4 : vector<1x512xf32> to vector<16x512xf32>
    %6 = arith.addf %3, %5 : vector<16x512xf32>
    %cst_5 = arith.constant 0.000000e+00 : f32
    %7 = vector.broadcast %cst_5 : f32 to vector<16x512xf32>
    %8 = arith.maximumf %6, %7 : vector<16x512xf32>
    %9 = arith.truncf %8 : vector<16x512xf32> to vector<16x512xbf16>
    %c0_6 = arith.constant 0 : index
    %c0_7 = arith.constant 0 : index
    %10 = vector.load %arg4[%c0_6, %c0_7] : memref<512x128xbf16, #tpu.memory_space<vmem>>, vector<512x128xbf16>
    %cst_8 = arith.constant dense<0.000000e+00> : vector<16x128xf32>
    %11 = tpu.matmul %9, %10, %cst_8 {dimension_numbers = #tpu.dot_dimension_numbers<[1], [0], [0], [1], [0, 0, 1, 1], [], []>} : vector<16x512xbf16>, vector<512x128xbf16>, vector<16x128xf32> -> vector<16x128xf32>
    %c0_9 = arith.constant 0 : index
    %c0_10 = arith.constant 0 : index
    %12 = vector.load %arg1[%c0_9, %c0_10] : memref<16x128xf32, #tpu.memory_space<vmem>>, vector<16x128xf32>
    %13 = arith.addf %12, %11 : vector<16x128xf32>
    %c0_11 = arith.constant 0 : index
    %c0_12 = arith.constant 0 : index
    %14 = vector.load %arg5[%c0_11, %c0_12] : memref<1x128xf32, #tpu.memory_space<vmem>>, vector<1x128xf32>
    %15 = vector.broadcast %14 : vector<1x128xf32> to vector<16x128xf32>
    %16 = arith.addf %13, %15 : vector<16x128xf32>
    %c0_13 = arith.constant 0 : index
    %c0_14 = arith.constant 0 : index
    %17 = vector.load %arg6[%c0_13, %c0_14] : memref<1x128xf32, #tpu.memory_space<vmem>>, vector<1x128xf32>
    %c0_15 = arith.constant 0 : index
    %c0_16 = arith.constant 0 : index
    %18 = vector.load %arg7[%c0_15, %c0_16] : memref<1x128xf32, #tpu.memory_space<vmem>>, vector<1x128xf32>
    %cst_17 = arith.constant dense<0.000000e+00> : vector<16xf32>
    %19 = vector.multi_reduction <add>, %16, %cst_17 [1] : vector<16x128xf32> to vector<16xf32>
    %20 = vector.shape_cast %19 : vector<16xf32> to vector<16x1xf32>
    %cst_18 = arith.constant 1.280000e+02 : f32
    %21 = vector.broadcast %cst_18 : f32 to vector<16x1xf32>
    %22 = arith.divf %20, %21 : vector<16x1xf32>
    %23 = vector.broadcast %22 : vector<16x1xf32> to vector<16x128xf32>
    %24 = arith.subf %16, %23 : vector<16x128xf32>
    %25 = arith.mulf %24, %24 : vector<16x128xf32>
    %cst_19 = arith.constant dense<0.000000e+00> : vector<16xf32>
    %26 = vector.multi_reduction <add>, %25, %cst_19 [1] : vector<16x128xf32> to vector<16xf32>
    %27 = vector.shape_cast %26 : vector<16xf32> to vector<16x1xf32>
    %cst_20 = arith.constant 1.280000e+02 : f32
    %28 = vector.broadcast %cst_20 : f32 to vector<16x1xf32>
    %29 = arith.divf %27, %28 : vector<16x1xf32>
    %cst_21 = arith.constant 9.99999974E-6 : f32
    %30 = vector.broadcast %cst_21 : f32 to vector<16x1xf32>
    %31 = arith.addf %29, %30 : vector<16x1xf32>
    %32 = math.rsqrt %31 : vector<16x1xf32>
    %33 = vector.broadcast %32 : vector<16x1xf32> to vector<16x128xf32>
    %34 = arith.mulf %24, %33 : vector<16x128xf32>
    %35 = vector.broadcast %17 : vector<1x128xf32> to vector<16x128xf32>
    %36 = arith.mulf %34, %35 : vector<16x128xf32>
    %37 = vector.broadcast %18 : vector<1x128xf32> to vector<16x128xf32>
    %38 = arith.addf %36, %37 : vector<16x128xf32>
    %c0_22 = arith.constant 0 : index
    %c0_23 = arith.constant 0 : index
    %39 = vector.load %arg8[%c0_22, %c0_23] : memref<16x128xf32, #tpu.memory_space<vmem>>, vector<16x128xf32>
    tpu.vector_store %arg8[%c0_22, %c0_23], %38 {strides = array<i32>} : memref<16x128xf32, #tpu.memory_space<vmem>>, vector<16x128xf32>,
    return
  }
  func.func @transform_0(%arg0: i32) -> (i32, i32) {
    %c0_i32 = arith.constant 0 : i32
    %c0_i32_0 = arith.constant 0 : i32
    return %arg0, %c0_i32 : i32, i32
  }
  func.func @transform_1(%arg0: i32) -> (i32, i32) {
    %c0_i32 = arith.constant 0 : i32
    %c0_i32_0 = arith.constant 0 : i32
    %c0_i32_1 = arith.constant 0 : i32
    return %c0_i32, %c0_i32_0 : i32, i32
  }
  func.func @transform_2(%arg0: i32) -> (i32, i32) {
    %c0_i32 = arith.constant 0 : i32
    %c0_i32_0 = arith.constant 0 : i32
    %c0_i32_1 = arith.constant 0 : i32
    return %c0_i32, %c0_i32_0 : i32, i32
  }
  func.func @transform_3(%arg0: i32) -> (i32, i32) {
    %c0_i32 = arith.constant 0 : i32
    %c0_i32_0 = arith.constant 0 : i32
    %c0_i32_1 = arith.constant 0 : i32
    return %c0_i32, %c0_i32_0 : i32, i32
  }
  func.func @transform_4(%arg0: i32) -> (i32, i32) {
    %c0_i32 = arith.constant 0 : i32
    %c0_i32_0 = arith.constant 0 : i32
    %c0_i32_1 = arith.constant 0 : i32
    return %c0_i32, %c0_i32_0 : i32, i32
  }
  func.func @transform_5(%arg0: i32) -> (i32, i32) {
    %c0_i32 = arith.constant 0 : i32
    %c0_i32_0 = arith.constant 0 : i32
    %c0_i32_1 = arith.constant 0 : i32
    return %c0_i32, %c0_i32_0 : i32, i32
  }
  func.func @transform_6(%arg0: i32) -> (i32, i32) {
    %c0_i32 = arith.constant 0 : i32
    %c0_i32_0 = arith.constant 0 : i32
    %c0_i32_1 = arith.constant 0 : i32
    return %c0_i32, %c0_i32_0 : i32, i32
  }
  func.func @transform_7(%arg0: i32) -> (i32, i32) {
    %c0_i32 = arith.constant 0 : i32
    %c0_i32_0 = arith.constant 0 : i32
    return %arg0, %c0_i32 : i32, i32
  }
}

</mosaic_0001>

<llo_original>
// kernel: position_wise_ffn.1
$region0: #{position_wise_ffn.1}
  #allocation0 [shape = 'u32[]', space=smem, size = 0x4, offset = 0x4, fixed_abs, tag = 'smem constant byte address 0x4 - core index']
  #allocation1 [shape = 'u32[72,128]{1,0:T(1,128)}', space=vmem, size = 0x9000, scoped, tag = 'internal scratch']
  %s0 = inlined_call_operand.vmem [shape: f32[16,128], index: 0, kind: input, shape index: {}]
  %s1 = inlined_call_operand.vmem [shape: bf16[128,512], index: 1, kind: input, shape index: {}]
  %s2 = inlined_call_operand.vmem [shape: f32[1,512], index: 2, kind: input, shape index: {}]
  %s3 = inlined_call_operand.vmem [shape: bf16[512,128], index: 3, kind: input, shape index: {}]
  %s4 = inlined_call_operand.vmem [shape: f32[1,128], index: 4, kind: input, shape index: {}]
  %s5 = inlined_call_operand.vmem [shape: f32[1,128], index: 5, kind: input, shape index: {}]
  %s6 = inlined_call_operand.vmem [shape: f32[1,128], index: 6, kind: input, shape index: {}]
  %s7 = inlined_call_operand.hbm [shape: f32[16,128], index: 7, kind: output, shape index: {}]
  %s8 = sld [smem:[#allocation0]]
  $region38: #{position_wise_ffn.1} parent=0
    _
  %s10 = ssub.s32 1, %s8
  %s11 = scalar_select 0, %s10, %s8
  $region1: #{position_wise_ffn.1} parent=0
    #allocation2 [shape = 'u8[8192]{0}', space=vmem, size = 0x2000, scoped, tag = 'output window, operand 0, single buffered']
    #allocation3 [shape = 's32[1]{0}', space=sflag, size = 0x4, scoped, tag = 'scoped memory for position_wise_ffn.1']
    %12 = vsyncpa [#allocation3], 0
    // Predicated region
    $region2: #{position_wise_ffn.1} parent=1 // pred_check
      _
    $region3: #{position_wise_ffn.1} parent=1 // pred_check_branch
      %14 = sbr.rel (0) target = $region5
    $region4: #{position_wise_ffn.1} parent=1 // pred_region
      _
    $region5: #{position_wise_ffn.1} parent=1 // pred_fallthru
      _
    // Predicated region
    $region6: #{position_wise_ffn.1} parent=1 // pred_check
      _
    $region7: #{position_wise_ffn.1} parent=1 // pred_check_branch
      %16 = sbr.rel (0) target = $region9
    $region8: #{position_wise_ffn.1} parent=1 // pred_region
      _
    $region9: #{position_wise_ffn.1} parent=1 // pred_fallthru
      _
    // Predicated region
    $region10: #{position_wise_ffn.1} parent=1 // pred_check
      _
    $region11: #{position_wise_ffn.1} parent=1 // pred_check_branch
      %18 = sbr.rel (0) target = $region13
    $region12: #{position_wise_ffn.1} parent=1 // pred_region
      _
    $region13: #{position_wise_ffn.1} parent=1 // pred_fallthru
      _
    // Predicated region
    $region14: #{position_wise_ffn.1} parent=1 // pred_check
      _
    $region15: #{position_wise_ffn.1} parent=1 // pred_check_branch
      %20 = sbr.rel (0) target = $region17
    $region16: #{position_wise_ffn.1} parent=1 // pred_region
      _
    $region17: #{position_wise_ffn.1} parent=1 // pred_fallthru
      _
    // Predicated region
    $region18: #{position_wise_ffn.1} parent=1 // pred_check
      _
    $region19: #{position_wise_ffn.1} parent=1 // pred_check_branch
      %22 = sbr.rel (0) target = $region21
    $region20: #{position_wise_ffn.1} parent=1 // pred_region
      _
    $region21: #{position_wise_ffn.1} parent=1 // pred_fallthru
      _
    // Predicated region
    $region22: #{position_wise_ffn.1} parent=1 // pred_check
      _
    $region23: #{position_wise_ffn.1} parent=1 // pred_check_branch
      %24 = sbr.rel (0) target = $region25
    $region24: #{position_wise_ffn.1} parent=1 // pred_region
      _
    $region25: #{position_wise_ffn.1} parent=1 // pred_fallthru
      _
    // Predicated region
    $region26: #{position_wise_ffn.1} parent=1 // pred_check
      _
    $region27: #{position_wise_ffn.1} parent=1 // pred_check_branch
      %26 = sbr.rel (0) target = $region29
    $region28: #{position_wise_ffn.1} parent=1 // pred_region
      _
    $region29: #{position_wise_ffn.1} parent=1 // pred_fallthru
      _
    %v27 = vld [vmem:[%s0] sm:$0xff]
    %v28 = vld [vmem:[%s0 + $0x8] sm:$0xff]
    %v29 = vpack.c.bf16 %v28, %v27
    %v30 = vld [vmem:[%s1] sm:$0xff]
    %v31 = vld [vmem:[%s1 + $0x8] sm:$0xff]
    %v32 = vld [vmem:[%s1 + $0x10] sm:$0xff]
    %v33 = vld [vmem:[%s1 + $0x18] sm:$0xff]
    %v34 = vld [vmem:[%s1 + $0x20] sm:$0xff]
    %v35 = vld [vmem:[%s1 + $0x28] sm:$0xff]
    %v36 = vld [vmem:[%s1 + $0x30] sm:$0xff]
    %v37 = vld [vmem:[%s1 + $0x38] sm:$0xff]
    %v38 = vld [vmem:[%s1 + $0x40] sm:$0xff]
    %v39 = vld [vmem:[%s1 + $0x48] sm:$0xff]
    %v40 = vld [vmem:[%s1 + $0x50] sm:$0xff]
    %v41 = vld [vmem:[%s1 + $0x58] sm:$0xff]
    %v42 = vld [vmem:[%s1 + $0x60] sm:$0xff]
    %v43 = vld [vmem:[%s1 + $0x68] sm:$0xff]
    %v44 = vld [vmem:[%s1 + $0x70] sm:$0xff]
    %v45 = vld [vmem:[%s1 + $0x78] sm:$0xff]
    %v46 = vld [vmem:[%s1 + $0x80] sm:$0xff]
    %v47 = vld [vmem:[%s1 + $0x88] sm:$0xff]
    %v48 = vld [vmem:[%s1 + $0x90] sm:$0xff]
    %v49 = vld [vmem:[%s1 + $0x98] sm:$0xff]
    %v50 = vld [vmem:[%s1 + $0xa0] sm:$0xff]
    %v51 = vld [vmem:[%s1 + $0xa8] sm:$0xff]
    %v52 = vld [vmem:[%s1 + $0xb0] sm:$0xff]
    %v53 = vld [vmem:[%s1 + $0xb8] sm:$0xff]
    %v54 = vld [vmem:[%s1 + $0xc0] sm:$0xff]
    %v55 = vld [vmem:[%s1 + $0xc8] sm:$0xff]
    %v56 = vld [vmem:[%s1 + $0xd0] sm:$0xff]
    %v57 = vld [vmem:[%s1 + $0xd8] sm:$0xff]
    %v58 = vld [vmem:[%s1 + $0xe0] sm:$0xff]
    %v59 = vld [vmem:[%s1 + $0xe8] sm:$0xff]
    %v60 = vld [vmem:[%s1 + $0xf0] sm:$0xff]
    %v61 = vld [vmem:[%s1 + $0xf8] sm:$0xff]
    %v62 = vld [vmem:[%s2] sm:$0xf]
    %v64 = vperm.slane %v62, 0
    %v65 = vperm.slane %v62, 1
    %v66 = vperm.slane %v62, 2
    %v67 = vperm.slane %v62, 3
    %v104 = vunpack.c.l.b16 %v30
    %v105 = vunpack.c.h.b16 %v30
    %v106 = vunpack.c.l.b16 %v31
    %v107 = vunpack.c.h.b16 %v31
    %v108 = vunpack.c.l.b16 %v32
    %v109 = vunpack.c.h.b16 %v32
    %v110 = vunpack.c.l.b16 %v33
    %v111 = vunpack.c.h.b16 %v33
    %v112 = vunpack.c.l.b16 %v34
    %v113 = vunpack.c.h.b16 %v34
    %v114 = vunpack.c.l.b16 %v35
    %v115 = vunpack.c.h.b16 %v35
    %v116 = vunpack.c.l.b16 %v36
    %v117 = vunpack.c.h.b16 %v36
    %v118 = vunpack.c.l.b16 %v37
    %v119 = vunpack.c.h.b16 %v37
    %v120 = vunpack.c.l.b16 %v38
    %v121 = vunpack.c.h.b16 %v38
    %v122 = vunpack.c.l.b16 %v39
    %v123 = vunpack.c.h.b16 %v39
    %v124 = vunpack.c.l.b16 %v40
    %v125 = vunpack.c.h.b16 %v40
    %v126 = vunpack.c.l.b16 %v41
    %v127 = vunpack.c.h.b16 %v41
    %v128 = vunpack.c.l.b16 %v42
    %v129 = vunpack.c.h.b16 %v42
    %v130 = vunpack.c.l.b16 %v43
    %v131 = vunpack.c.h.b16 %v43
    %v132 = vunpack.c.l.b16 %v44
    %v133 = vunpack.c.h.b16 %v44
    %v134 = vunpack.c.l.b16 %v45
    %v135 = vunpack.c.h.b16 %v45
    %v136 = vunpack.c.l.b16 %v46
    %v137 = vunpack.c.h.b16 %v46
    %v138 = vunpack.c.l.b16 %v47
    %v139 = vunpack.c.h.b16 %v47
    %v140 = vunpack.c.l.b16 %v48
    %v141 = vunpack.c.h.b16 %v48
    %v142 = vunpack.c.l.b16 %v49
    %v143 = vunpack.c.h.b16 %v49
    %v144 = vunpack.c.l.b16 %v50
    %v145 = vunpack.c.h.b16 %v50
    %v146 = vunpack.c.l.b16 %v51
    %v147 = vunpack.c.h.b16 %v51
    %v148 = vunpack.c.l.b16 %v52
    %v149 = vunpack.c.h.b16 %v52
    %v150 = vunpack.c.l.b16 %v53
    %v151 = vunpack.c.h.b16 %v53
    %v152 = vunpack.c.l.b16 %v54
    %v153 = vunpack.c.h.b16 %v54
    %v154 = vunpack.c.l.b16 %v55
    %v155 = vunpack.c.h.b16 %v55
    %v156 = vunpack.c.l.b16 %v56
    %v157 = vunpack.c.h.b16 %v56
    %v158 = vunpack.c.l.b16 %v57
    %v159 = vunpack.c.h.b16 %v57
    %v160 = vunpack.c.l.b16 %v58
    %v161 = vunpack.c.h.b16 %v58
    %v162 = vunpack.c.l.b16 %v59
    %v163 = vunpack.c.h.b16 %v59
    %v164 = vunpack.c.l.b16 %v60
    %v165 = vunpack.c.h.b16 %v60
    %v166 = vunpack.c.l.b16 %v61
    %v167 = vunpack.c.h.b16 %v61
    %v168 = vpack.c.b16 %v108, %v104
    %v169 = vpack.c.b16 %v109, %v105
    %v170 = vpack.c.b16 %v110, %v106
    %v171 = vpack.c.b16 %v111, %v107
    %v172 = vpack.c.b16 %v116, %v112
    %v173 = vpack.c.b16 %v117, %v113
    %v174 = vpack.c.b16 %v118, %v114
    %v175 = vpack.c.b16 %v119, %v115
    %v176 = vpack.c.b16 %v124, %v120
    %v177 = vpack.c.b16 %v125, %v121
    %v178 = vpack.c.b16 %v126, %v122
    %v179 = vpack.c.b16 %v127, %v123
    %v180 = vpack.c.b16 %v132, %v128
    %v181 = vpack.c.b16 %v133, %v129
    %v182 = vpack.c.b16 %v134, %v130
    %v183 = vpack.c.b16 %v135, %v131
    %v184 = vpack.c.b16 %v140, %v136
    %v185 = vpack.c.b16 %v141, %v137
    %v186 = vpack.c.b16 %v142, %v138
    %v187 = vpack.c.b16 %v143, %v139
    %v188 = vpack.c.b16 %v148, %v144
    %v189 = vpack.c.b16 %v149, %v145
    %v190 = vpack.c.b16 %v150, %v146
    %v191 = vpack.c.b16 %v151, %v147
    %v192 = vpack.c.b16 %v156, %v152
    %v193 = vpack.c.b16 %v157, %v153
    %v194 = vpack.c.b16 %v158, %v154
    %v195 = vpack.c.b16 %v159, %v155
    %v196 = vpack.c.b16 %v164, %v160
    %v197 = vpack.c.b16 %v165, %v161
    %v198 = vpack.c.b16 %v166, %v162
    %v199 = vpack.c.b16 %v167, %v163
    %232 = vmatpush.bf16.msra.mxu0 %v196
    %233 = vmatpush.bf16.msra.mxu0 %v192
    %234 = vmatpush.bf16.msra.mxu0 %v188
    %235 = vmatpush.bf16.msra.mxu0 %v184
    %236 = vmatpush.bf16.msra.mxu0 %v180
    %237 = vmatpush.bf16.msra.mxu0 %v176
    %238 = vmatpush.bf16.msra.mxu0 %v172
    %239 = vmatpush.bf16.msra.mxu0 %v168
    %240 = vmatmul.bf16.gmra.mxu0 %v29
    %v241 = vpop.f32.mrf.mxu0
    %v242 = vadd.f32 %v64, %v241
    %v243 = vpop.f32.mrf.mxu0
    %v244 = vadd.f32 %v64, %v243
    %245 = vdwg.mxu0
    %246 = vmatpush.bf16.msra.mxu0 %v197
    %247 = vmatpush.bf16.msra.mxu0 %v193
    %248 = vmatpush.bf16.msra.mxu0 %v189
    %249 = vmatpush.bf16.msra.mxu0 %v185
    %250 = vmatpush.bf16.msra.mxu0 %v181
    %251 = vmatpush.bf16.msra.mxu0 %v177
    %252 = vmatpush.bf16.msra.mxu0 %v173
    %253 = vmatpush.bf16.msra.mxu0 %v169
    %254 = vmatmul.bf16.gmra.mxu0 %v29
    %v255 = vpop.f32.mrf.mxu0
    %v256 = vadd.f32 %v65, %v255
    %v257 = vpop.f32.mrf.mxu0
    %v258 = vadd.f32 %v65, %v257
    %259 = vdwg.mxu0
    %260 = vmatpush.bf16.msra.mxu0 %v198
    %261 = vmatpush.bf16.msra.mxu0 %v194
    %262 = vmatpush.bf16.msra.mxu0 %v190
    %263 = vmatpush.bf16.msra.mxu0 %v186
    %264 = vmatpush.bf16.msra.mxu0 %v182
    %265 = vmatpush.bf16.msra.mxu0 %v178
    %266 = vmatpush.bf16.msra.mxu0 %v174
    %267 = vmatpush.bf16.msra.mxu0 %v170
    %268 = vmatmul.bf16.gmra.mxu0 %v29
    %v269 = vpop.f32.mrf.mxu0
    %v270 = vadd.f32 %v66, %v269
    %v271 = vpop.f32.mrf.mxu0
    %v272 = vadd.f32 %v66, %v271
    %273 = vdwg.mxu0
    %274 = vmatpush.bf16.msra.mxu0 %v199
    %275 = vmatpush.bf16.msra.mxu0 %v195
    %276 = vmatpush.bf16.msra.mxu0 %v191
    %277 = vmatpush.bf16.msra.mxu0 %v187
    %278 = vmatpush.bf16.msra.mxu0 %v183
    %279 = vmatpush.bf16.msra.mxu0 %v179
    %280 = vmatpush.bf16.msra.mxu0 %v175
    %281 = vmatpush.bf16.msra.mxu0 %v171
    %282 = vmatmul.bf16.gmra.mxu0 %v29
    %v283 = vpop.f32.mrf.mxu0
    %v284 = vadd.f32 %v67, %v283
    %v285 = vpop.f32.mrf.mxu0
    %v286 = vadd.f32 %v67, %v285
    %287 = vdwg.mxu0
    %v288 = vmax.f32 %v242, 0.0
    %v289 = vmax.f32 %v256, 0.0
    %v290 = vmax.f32 %v270, 0.0
    %v291 = vmax.f32 %v284, 0.0
    %v292 = vmax.f32 %v244, 0.0
    %v293 = vmax.f32 %v258, 0.0
    %v294 = vmax.f32 %v272, 0.0
    %v295 = vmax.f32 %v286, 0.0
    %v296 = vpack.c.bf16 %v292, %v288
    %v297 = vpack.c.bf16 %v293, %v289
    %v298 = vpack.c.bf16 %v294, %v290
    %v299 = vpack.c.bf16 %v295, %v291
    %v300 = vld [vmem:[%s3] sm:$0xf]
    %v301 = vld [vmem:[%s3 + $0x4] sm:$0xf]
    %v302 = vld [vmem:[%s3 + $0x8] sm:$0xf]
    %v303 = vld [vmem:[%s3 + $0xc] sm:$0xf]
    %v304 = vld [vmem:[%s3 + $0x10] sm:$0xf]
    %v305 = vld [vmem:[%s3 + $0x14] sm:$0xf]
    %v306 = vld [vmem:[%s3 + $0x18] sm:$0xf]
    %v307 = vld [vmem:[%s3 + $0x1c] sm:$0xf]
    %v308 = vld [vmem:[%s3 + $0x20] sm:$0xf]
    %v309 = vld [vmem:[%s3 + $0x24] sm:$0xf]
    %v310 = vld [vmem:[%s3 + $0x28] sm:$0xf]
    %v311 = vld [vmem:[%s3 + $0x2c] sm:$0xf]
    %v312 = vld [vmem:[%s3 + $0x30] sm:$0xf]
    %v313 = vld [vmem:[%s3 + $0x34] sm:$0xf]
    %v314 = vld [vmem:[%s3 + $0x38] sm:$0xf]
    %v315 = vld [vmem:[%s3 + $0x3c] sm:$0xf]
    %v316 = vld [vmem:[%s3 + $0x40] sm:$0xf]
    %v317 = vld [vmem:[%s3 + $0x44] sm:$0xf]
    %v318 = vld [vmem:[%s3 + $0x48] sm:$0xf]
    %v319 = vld [vmem:[%s3 + $0x4c] sm:$0xf]
    %v320 = vld [vmem:[%s3 + $0x50] sm:$0xf]
    %v321 = vld [vmem:[%s3 + $0x54] sm:$0xf]
    %v322 = vld [vmem:[%s3 + $0x58] sm:$0xf]
    %v323 = vld [vmem:[%s3 + $0x5c] sm:$0xf]
    %v324 = vld [vmem:[%s3 + $0x60] sm:$0xf]
    %v325 = vld [vmem:[%s3 + $0x64] sm:$0xf]
    %v326 = vld [vmem:[%s3 + $0x68] sm:$0xf]
    %v327 = vld [vmem:[%s3 + $0x6c] sm:$0xf]
    %v328 = vld [vmem:[%s3 + $0x70] sm:$0xf]
    %v329 = vld [vmem:[%s3 + $0x74] sm:$0xf]
    %v330 = vld [vmem:[%s3 + $0x78] sm:$0xf]
    %v331 = vld [vmem:[%s3 + $0x7c] sm:$0xf]
    %v332 = vld [vmem:[%s3 + $0x80] sm:$0xf]
    %v333 = vld [vmem:[%s3 + $0x84] sm:$0xf]
    %v334 = vld [vmem:[%s3 + $0x88] sm:$0xf]
    %v335 = vld [vmem:[%s3 + $0x8c] sm:$0xf]
    %v336 = vld [vmem:[%s3 + $0x90] sm:$0xf]
    %v337 = vld [vmem:[%s3 + $0x94] sm:$0xf]
    %v338 = vld [vmem:[%s3 + $0x98] sm:$0xf]
    %v339 = vld [vmem:[%s3 + $0x9c] sm:$0xf]
    %v340 = vld [vmem:[%s3 + $0xa0] sm:$0xf]
    %v341 = vld [vmem:[%s3 + $0xa4] sm:$0xf]
    %v342 = vld [vmem:[%s3 + $0xa8] sm:$0xf]
    %v343 = vld [vmem:[%s3 + $0xac] sm:$0xf]
    %v344 = vld [vmem:[%s3 + $0xb0] sm:$0xf]
    %v345 = vld [vmem:[%s3 + $0xb4] sm:$0xf]
    %v346 = vld [vmem:[%s3 + $0xb8] sm:$0xf]
    %v347 = vld [vmem:[%s3 + $0xbc] sm:$0xf]
    %v348 = vld [vmem:[%s3 + $0xc0] sm:$0xf]
    %v349 = vld [vmem:[%s3 + $0xc4] sm:$0xf]
    %v350 = vld [vmem:[%s3 + $0xc8] sm:$0xf]
    %v351 = vld [vmem:[%s3 + $0xcc] sm:$0xf]
    %v352 = vld [vmem:[%s3 + $0xd0] sm:$0xf]
    %v353 = vld [vmem:[%s3 + $0xd4] sm:$0xf]
    %v354 = vld [vmem:[%s3 + $0xd8] sm:$0xf]
    %v355 = vld [vmem:[%s3 + $0xdc] sm:$0xf]
    %v356 = vld [vmem:[%s3 + $0xe0] sm:$0xf]
    %v357 = vld [vmem:[%s3 + $0xe4] sm:$0xf]
    %v358 = vld [vmem:[%s3 + $0xe8] sm:$0xf]
    %v359 = vld [vmem:[%s3 + $0xec] sm:$0xf]
    %v360 = vld [vmem:[%s3 + $0xf0] sm:$0xf]
    %v361 = vld [vmem:[%s3 + $0xf4] sm:$0xf]
    %v362 = vld [vmem:[%s3 + $0xf8] sm:$0xf]
    %v363 = vld [vmem:[%s3 + $0xfc] sm:$0xf]
    %v428 = vunpack.c.l.b16 %v300
    %v429 = vunpack.c.l.b16 %v301
    %v430 = vunpack.c.l.b16 %v302
    %v431 = vunpack.c.l.b16 %v303
    %v432 = vunpack.c.l.b16 %v304
    %v433 = vunpack.c.l.b16 %v305
    %v434 = vunpack.c.l.b16 %v306
    %v435 = vunpack.c.l.b16 %v307
    %v436 = vunpack.c.l.b16 %v308
    %v437 = vunpack.c.l.b16 %v309
    %v438 = vunpack.c.l.b16 %v310
    %v439 = vunpack.c.l.b16 %v311
    %v440 = vunpack.c.l.b16 %v312
    %v441 = vunpack.c.l.b16 %v313
    %v442 = vunpack.c.l.b16 %v314
    %v443 = vunpack.c.l.b16 %v315
    %v444 = vunpack.c.l.b16 %v316
    %v445 = vunpack.c.l.b16 %v317
    %v446 = vunpack.c.l.b16 %v318
    %v447 = vunpack.c.l.b16 %v319
    %v448 = vunpack.c.l.b16 %v320
    %v449 = vunpack.c.l.b16 %v321
    %v450 = vunpack.c.l.b16 %v322
    %v451 = vunpack.c.l.b16 %v323
    %v452 = vunpack.c.l.b16 %v324
    %v453 = vunpack.c.l.b16 %v325
    %v454 = vunpack.c.l.b16 %v326
    %v455 = vunpack.c.l.b16 %v327
    %v456 = vunpack.c.l.b16 %v328
    %v457 = vunpack.c.l.b16 %v329
    %v458 = vunpack.c.l.b16 %v330
    %v459 = vunpack.c.l.b16 %v331
    %v460 = vunpack.c.l.b16 %v332
    %v461 = vunpack.c.l.b16 %v333
    %v462 = vunpack.c.l.b16 %v334
    %v463 = vunpack.c.l.b16 %v335
    %v464 = vunpack.c.l.b16 %v336
    %v465 = vunpack.c.l.b16 %v337
    %v466 = vunpack.c.l.b16 %v338
    %v467 = vunpack.c.l.b16 %v339
    %v468 = vunpack.c.l.b16 %v340
    %v469 = vunpack.c.l.b16 %v341
    %v470 = vunpack.c.l.b16 %v342
    %v471 = vunpack.c.l.b16 %v343
    %v472 = vunpack.c.l.b16 %v344
    %v473 = vunpack.c.l.b16 %v345
    %v474 = vunpack.c.l.b16 %v346
    %v475 = vunpack.c.l.b16 %v347
    %v476 = vunpack.c.l.b16 %v348
    %v477 = vunpack.c.l.b16 %v349
    %v478 = vunpack.c.l.b16 %v350
    %v479 = vunpack.c.l.b16 %v351
    %v480 = vunpack.c.l.b16 %v352
    %v481 = vunpack.c.l.b16 %v353
    %v482 = vunpack.c.l.b16 %v354
    %v483 = vunpack.c.l.b16 %v355
    %v484 = vunpack.c.l.b16 %v356
    %v485 = vunpack.c.l.b16 %v357
    %v486 = vunpack.c.l.b16 %v358
    %v487 = vunpack.c.l.b16 %v359
    %v488 = vunpack.c.l.b16 %v360
    %v489 = vunpack.c.l.b16 %v361
    %v490 = vunpack.c.l.b16 %v362
    %v491 = vunpack.c.l.b16 %v363
    %v492 = vpack.c.b16 %v429, %v428
    %v493 = vpack.c.b16 %v431, %v430
    %v494 = vpack.c.b16 %v433, %v432
    %v495 = vpack.c.b16 %v435, %v434
    %v496 = vpack.c.b16 %v437, %v436
    %v497 = vpack.c.b16 %v439, %v438
    %v498 = vpack.c.b16 %v441, %v440
    %v499 = vpack.c.b16 %v443, %v442
    %v500 = vpack.c.b16 %v445, %v444
    %v501 = vpack.c.b16 %v447, %v446
    %v502 = vpack.c.b16 %v449, %v448
    %v503 = vpack.c.b16 %v451, %v450
    %v504 = vpack.c.b16 %v453, %v452
    %v505 = vpack.c.b16 %v455, %v454
    %v506 = vpack.c.b16 %v457, %v456
    %v507 = vpack.c.b16 %v459, %v458
    %v508 = vpack.c.b16 %v461, %v460
    %v509 = vpack.c.b16 %v463, %v462
    %v510 = vpack.c.b16 %v465, %v464
    %v511 = vpack.c.b16 %v467, %v466
    %v512 = vpack.c.b16 %v469, %v468
    %v513 = vpack.c.b16 %v471, %v470
    %v514 = vpack.c.b16 %v473, %v472
    %v515 = vpack.c.b16 %v475, %v474
    %v516 = vpack.c.b16 %v477, %v476
    %v517 = vpack.c.b16 %v479, %v478
    %v518 = vpack.c.b16 %v481, %v480
    %v519 = vpack.c.b16 %v483, %v482
    %v520 = vpack.c.b16 %v485, %v484
    %v521 = vpack.c.b16 %v487, %v486
    %v522 = vpack.c.b16 %v489, %v488
    %v523 = vpack.c.b16 %v491, %v490
    %556 = vmatpush.bf16.msra.mxu0 %v499
    %557 = vmatpush.bf16.msra.mxu0 %v498
    %558 = vmatpush.bf16.msra.mxu0 %v497
    %559 = vmatpush.bf16.msra.mxu0 %v496
    %560 = vmatpush.bf16.msra.mxu0 %v495
    %561 = vmatpush.bf16.msra.mxu0 %v494
    %562 = vmatpush.bf16.msra.mxu0 %v493
    %563 = vmatpush.bf16.msra.mxu0 %v492
    %564 = vmatmul.bf16.gmra.mxu0 %v296
    %v565 = vpop.f32.mrf.mxu0
    %v566 = vadd.f32 0.0, %v565
    %v567 = vpop.f32.mrf.mxu0
    %v568 = vadd.f32 0.0, %v567
    %569 = vdwg.mxu0
    %570 = vmatpush.bf16.msra.mxu0 %v507
    %571 = vmatpush.bf16.msra.mxu0 %v506
    %572 = vmatpush.bf16.msra.mxu0 %v505
    %573 = vmatpush.bf16.msra.mxu0 %v504
    %574 = vmatpush.bf16.msra.mxu0 %v503
    %575 = vmatpush.bf16.msra.mxu0 %v502
    %576 = vmatpush.bf16.msra.mxu0 %v501
    %577 = vmatpush.bf16.msra.mxu0 %v500
    %578 = vmatmul.bf16.gmra.mxu0 %v297
    %v579 = vpop.f32.mrf.mxu0
    %v580 = vadd.f32 %v566, %v579
    %v581 = vpop.f32.mrf.mxu0
    %v582 = vadd.f32 %v568, %v581
    %583 = vdwg.mxu0
    %584 = vmatpush.bf16.msra.mxu0 %v515
    %585 = vmatpush.bf16.msra.mxu0 %v514
    %586 = vmatpush.bf16.msra.mxu0 %v513
    %587 = vmatpush.bf16.msra.mxu0 %v512
    %588 = vmatpush.bf16.msra.mxu0 %v511
    %589 = vmatpush.bf16.msra.mxu0 %v510
    %590 = vmatpush.bf16.msra.mxu0 %v509
    %591 = vmatpush.bf16.msra.mxu0 %v508
    %592 = vmatmul.bf16.gmra.mxu0 %v298
    %v593 = vpop.f32.mrf.mxu0
    %v594 = vadd.f32 %v580, %v593
    %v595 = vpop.f32.mrf.mxu0
    %v596 = vadd.f32 %v582, %v595
    %597 = vdwg.mxu0
    %598 = vmatpush.bf16.msra.mxu0 %v523
    %599 = vmatpush.bf16.msra.mxu0 %v522
    %600 = vmatpush.bf16.msra.mxu0 %v521
    %601 = vmatpush.bf16.msra.mxu0 %v520
    %602 = vmatpush.bf16.msra.mxu0 %v519
    %603 = vmatpush.bf16.msra.mxu0 %v518
    %604 = vmatpush.bf16.msra.mxu0 %v517
    %605 = vmatpush.bf16.msra.mxu0 %v516
    %606 = vmatmul.bf16.gmra.mxu0 %v299
    %v607 = vpop.f32.mrf.mxu0
    %v608 = vadd.f32 %v594, %v607
    %v609 = vpop.f32.mrf.mxu0
    %v610 = vadd.f32 %v596, %v609
    %611 = vdwg.mxu0
    %v612 = vadd.f32 %v27, %v608
    %v613 = vadd.f32 %v28, %v610
    %v614 = vld [vmem:[%s4] sm:$0x1]
    %v616 = vperm.slane %v614, 0
    %v618 = vadd.f32 %v612, %v616
    %v619 = vadd.f32 %v613, %v616
    %v620 = vld [vmem:[%s5] sm:$0x1]
    %v621 = vld [vmem:[%s6] sm:$0x1]
    %622 = vadd.xlane.f32.xlu0 %v618
    %v623 = vpop.xlane.xlu0 %622
    %624 = vadd.xlane.f32.xlu0 %v619
    %v625 = vpop.xlane.xlu0 %624
    %v626 = vrcp.pop 128.0
    %v627 = vmul.f32 128.0, %v626
    %v628 = vsub.f32 1.0, %v627
    %v629 = vmul.f32 %v626, %v628
    %v630 = vadd.f32 %v626, %v629
    %vm631 = vweird.f32 %v626
    %v632 = vsel %vm631, %v626, %v630
    %v633 = vmul.f32 %v623, %v632
    %v634 = vmul.f32 %v625, %v632
    %v635 = vsub.f32 %v618, %v633
    %v636 = vsub.f32 %v619, %v634
    %v637 = vmul.f32 %v635, %v635
    %v638 = vmul.f32 %v636, %v636
    %639 = vadd.xlane.f32.xlu0 %v637
    %v640 = vpop.xlane.xlu0 %639
    %641 = vadd.xlane.f32.xlu0 %v638
    %v642 = vpop.xlane.xlu0 %641
    %v643 = vmul.f32 %v640, %v632
    %v644 = vmul.f32 %v642, %v632
    %v645 = vadd.f32 %v643, 1e-05
    %v646 = vadd.f32 %v644, 1e-05
    %v647 = vrsqrt.pop %v645
    %v648 = vmul.f32 %v647, %v645
    %v649 = vmul.f32 %v648, %v647
    %v650 = vmul.f32 0.5, %v649
    %v651 = vsub.f32 1.5, %v650
    %v652 = vmul.f32 %v647, %v651
    %vm653 = vweird.f32 %v645
    %vm654 = vweird.f32 %v647
    %vm655 = vmor %vm653, %vm654
    %v656 = vsel %vm655, %v647, %v652
    %v657 = vrsqrt.pop %v646
    %v658 = vmul.f32 %v657, %v646
    %v659 = vmul.f32 %v658, %v657
    %v660 = vmul.f32 0.5, %v659
    %v661 = vsub.f32 1.5, %v660
    %v662 = vmul.f32 %v657, %v661
    %vm663 = vweird.f32 %v646
    %vm664 = vweird.f32 %v657
    %vm665 = vmor %vm663, %vm664
    %v666 = vsel %vm665, %v657, %v662
    %v667 = vmul.f32 %v635, %v656
    %v668 = vmul.f32 %v636, %v666
    %v670 = vperm.slane %v620, 0
    %v672 = vmul.f32 %v667, %v670
    %v673 = vmul.f32 %v668, %v670
    %v675 = vperm.slane %v621, 0
    %v677 = vadd.f32 %v672, %v675
    %v678 = vadd.f32 %v673, %v675
    %679 = vst [vmem:[#allocation2] sm:$0xff] %v677
    %680 = vst [vmem:[#allocation2 + $0x8] sm:$0xff] %v678
    // Predicated region
    $region30: #{position_wise_ffn.1} parent=1 // pred_check
      _
    $region31: #{position_wise_ffn.1} parent=1 // pred_check_branch
      %682 = sbr.rel (0) target = $region33
    $region32: #{position_wise_ffn.1} parent=1 // pred_region
      %684 = vsyncadd [#allocation3], 0
      %s685 = sshll.u32 [#allocation2], 4
      %s686 = int_to_ptr.vmem [resolvable:$true] %s685
      %s687 = sshll.u32 %s7, 4
      %s688 = int_to_ptr.hbm [resolvable:$true] %s687
      %693 = dma.vmem_to_hbm [thread:$0]  %s686, 256, %s688, [#allocation3], 128, 128, 8
    $region33: #{position_wise_ffn.1} parent=1 // pred_fallthru
      _
    // Predicated region
    $region34: #{position_wise_ffn.1} parent=1 // pred_check
      _
    $region35: #{position_wise_ffn.1} parent=1 // pred_check_branch
      %695 = sbr.rel (0) target = $region37
    $region36: #{position_wise_ffn.1} parent=1 // pred_region
      %697 = dma.done [#allocation3], 256
    $region37: #{position_wise_ffn.1} parent=1 // pred_fallthru
      _
    %698 = vsyncpa [#allocation3], 1

</llo_original>
